<compile_context>
chip_gen: v7x
topology: tpu7x:2x2x1
jax: 0.10.0
libtpu: 0.0.40
codegen_flags: <defaults>
</compile_context>

<pallas_src>
import math
from functools import partial

import jax
import jax.numpy as jnp
from jax.experimental import pallas as pl
from jax.experimental.pallas import tpu as pltpu


def _flash_sdpa_kernel(q_ref, k_ref, v_ref, mask_ref, o_ref,
                       m_sc, l_sc, acc_sc, *, scale, n_rep, seqlen):
    # q_ref    : (1, 1, M, D)   M = n_rep * seqlen   (folded GQA group, revisited over kv axis)
    # k_ref    : (1, 1, T_BLK, D)
    # v_ref    : (1, 1, T_BLK, D)
    # mask_ref : (S, T_BLK)     additive float mask tile
    # o_ref    : (1, 1, M, D)   written once, at the last kv block
    # m_sc/l_sc: (M, 1) f32     running max / running denom
    # acc_sc   : (M, D) f32     running (unnormalized) output accumulator
    t = pl.program_id(2)

    @pl.when(t == 0)
    def _init():
        m_sc[...] = jnp.full_like(m_sc, -jnp.inf)
        l_sc[...] = jnp.zeros_like(l_sc)
        acc_sc[...] = jnp.zeros_like(acc_sc)

    # Fold the softmax scale into q (O(M*D) instead of scaling the (M, T_BLK) scores).
    q = q_ref[0, 0] * scale                     # (M, D), native dtype
    k = k_ref[0, 0]                             # (T_BLK, D)
    v = v_ref[0, 0]                             # (T_BLK, D)

    # Scores: contract the D axes directly; no explicit K transpose is materialized.
    s = jax.lax.dot_general(
        q, k,
        dimension_numbers=(((1,), (1,)), ((), ())),
        preferred_element_type=jnp.float32,
    )                                           # (M, T_BLK) f32

    # Additive mask tile, replicated across the n_rep folded heads (row r*S + s uses mask row s).
    s = s + jnp.tile(mask_ref[...].astype(jnp.float32), (n_rep, 1))

    # Online softmax update.
    m_prev = m_sc[...]                                             # (M, 1)
    m_new = jnp.maximum(m_prev, jnp.max(s, axis=-1, keepdims=True))
    # Guard fully-masked tiles (row max == -inf) so exp never produces NaN.
    m_safe = jnp.where(m_new > -jnp.inf, m_new, 0.0)
    alpha = jnp.exp(m_prev - m_safe)                               # (M, 1)
    p = jnp.exp(s - m_safe)                                        # (M, T_BLK)

    l_sc[...] = alpha * l_sc[...] + jnp.sum(p, axis=-1, keepdims=True)
    acc_sc[...] = alpha * acc_sc[...] + jax.lax.dot_general(
        p.astype(v.dtype), v,
        dimension_numbers=(((1,), (0,)), ((), ())),
        preferred_element_type=jnp.float32,
    )
    m_sc[...] = m_new

    @pl.when(t == pl.num_programs(2) - 1)
    def _finalize():
        l = l_sc[...]
        l = jnp.where(l == 0.0, 1.0, l)   # fully-masked rows -> 0 output instead of NaN
        o_ref[0, 0] = (acc_sc[...] * pl.reciprocal(l, approx=False)).astype(o_ref.dtype)


def sdpa_forward(input_pos, q, k, v, k_cache, v_cache, mask, n_rep, dim, kv_block=512):
    """Mirror of SDPA.forward (enable_dynamic_shape=False, transpose_cache=True)."""
    bsz, seqlen, n_heads, head_dim = q.shape
    assert n_heads * head_dim == dim
    assert n_heads % n_rep == 0
    n_kv_heads = n_heads // n_rep

    # k/v: (B, S, KVH, D) -> (B, KVH, S, D)      (the module's .transpose(1, 2))
    k_t = jnp.transpose(k, (0, 2, 1, 3))
    v_t = jnp.transpose(v, (0, 2, 1, 3))

    # KVCache.update (static-shape path): cache[:, :, input_pos] = val
    # TODO(synk): fuse the cache scatter into the kernel (input_output_aliases) / rely on
    # buffer donation so the functional .at[].set does not copy the whole cache.
    k_cache = k_cache.at[:, :, input_pos, :].set(k_t)
    v_cache = v_cache.at[:, :, input_pos, :].set(v_t)

    # attn_mask = mask[None, None, input_pos] -> (S, T) additive slice (leading dims broadcast)
    attn_mask = mask[input_pos]
    T = k_cache.shape[2]

    # KV tile size: constant VMEM footprint, pipelined along the KV axis.
    t_blk = min(kv_block, T)
    if T % t_blk != 0:
        t_blk = T
    num_kv_blocks = T // t_blk

    # Fold the GQA group into the matmul M dimension:
    # (B, S, H, D) -> (B, H, S, D) -> (B, KVH, n_rep*S, D); head hh = kvh*n_rep + r.
    M = n_rep * seqlen
    q_f = jnp.transpose(q, (0, 2, 1, 3)).reshape(bsz, n_kv_heads, M, head_dim)

    scale = 1.0 / math.sqrt(head_dim)
    kernel = partial(_flash_sdpa_kernel, scale=scale, n_rep=n_rep, seqlen=seqlen)

    itemsize = jnp.dtype(q.dtype).itemsize
    bytes_accessed = (
        q_f.size * itemsize
        + k_cache.size * jnp.dtype(k_cache.dtype).itemsize
        + v_cache.size * jnp.dtype(v_cache.dtype).itemsize
        + attn_mask.size * jnp.dtype(attn_mask.dtype).itemsize * bsz * n_kv_heads
        + bsz * n_heads * seqlen * head_dim * itemsize
    )
    cost = pl.CostEstimate(
        flops=4 * bsz * n_heads * seqlen * T * head_dim,
        transcendentals=bsz * n_heads * seqlen * T,
        bytes_accessed=bytes_accessed,
    )

    y = pl.pallas_call(
        kernel,
        out_shape=jax.ShapeDtypeStruct((bsz, n_kv_heads, M, head_dim), q.dtype),
        grid_spec=pltpu.PrefetchScalarGridSpec(
            num_scalar_prefetch=0,
            grid=(bsz, n_kv_heads, num_kv_blocks),
            in_specs=[
                # q tile is revisited across the kv axis -> loaded once per (b, kv-head)
                pl.BlockSpec((1, 1, M, head_dim), lambda b, h, t: (b, h, 0, 0)),
                pl.BlockSpec((1, 1, t_blk, head_dim), lambda b, h, t: (b, h, t, 0)),
                pl.BlockSpec((1, 1, t_blk, head_dim), lambda b, h, t: (b, h, t, 0)),
                pl.BlockSpec((seqlen, t_blk), lambda b, h, t: (0, t)),
            ],
            out_specs=pl.BlockSpec((1, 1, M, head_dim), lambda b, h, t: (b, h, 0, 0)),
            scratch_shapes=[
                pltpu.VMEM((M, 1), jnp.float32),          # running max
                pltpu.VMEM((M, 1), jnp.float32),          # running denom
                pltpu.VMEM((M, head_dim), jnp.float32),   # output accumulator
            ],
        ),
        compiler_params=pltpu.CompilerParams(
            dimension_semantics=("parallel", "parallel", "arbitrary"),
            vmem_limit_bytes=64 * 1024 * 1024,
        ),
        cost_estimate=cost,
    )(q_f, k_cache, v_cache, attn_mask)

    # (B, KVH, n_rep*S, D) -> (B, KVH, n_rep, S, D) -> (B, S, KVH, n_rep, D) -> (B, S, dim)
    out = jnp.transpose(
        y.reshape(bsz, n_kv_heads, n_rep, seqlen, head_dim), (0, 3, 1, 2, 4)
    ).reshape(bsz, seqlen, dim)
    return out, k_cache, v_cache


def _reference(input_pos, q, k, v, k_cache, v_cache, mask, n_rep, dim):
    bsz, seqlen, n_heads, head_dim = q.shape
    q_t = jnp.transpose(q, (0, 2, 1, 3))
    k_t = jnp.transpose(k, (0, 2, 1, 3))
    v_t = jnp.transpose(v, (0, 2, 1, 3))
    k_cache = k_cache.at[:, :, input_pos, :].set(k_t)
    v_cache = v_cache.at[:, :, input_pos, :].set(v_t)
    attn_mask = mask[input_pos]
    k_rep = jnp.repeat(k_cache, n_rep, axis=1)
    v_rep = jnp.repeat(v_cache, n_rep, axis=1)
    scale = 1.0 / math.sqrt(head_dim)
    s = jnp.einsum("bhsd,bhtd->bhst", q_t, k_rep) * scale + attn_mask[None, None]
    p = jax.nn.softmax(s, axis=-1)
    y = jnp.einsum("bhst,bhtd->bhsd", p, v_rep)
    return jnp.transpose(y, (0, 2, 1, 3)).reshape(bsz, seqlen, dim)


if __name__ == "__main__":
    # Small, module-consistent shapes; max_seq_len chosen so the online-softmax
    # path is exercised with 2 KV blocks (kv_block=128).
    max_batch_size = 2
    max_seq_len = 256
    n_kv_heads = 2
    n_rep = 2
    n_heads = n_kv_heads * n_rep
    head_dim = 64
    dim = n_heads * head_dim
    bsz = 2
    seqlen = 8

    key = jax.random.PRNGKey(0)
    kq, kk, kv_ = jax.random.split(key, 3)
    q = jax.random.normal(kq, (bsz, seqlen, n_heads, head_dim), dtype=jnp.float32)
    k = jax.random.normal(kk, (bsz, seqlen, n_kv_heads, head_dim), dtype=jnp.float32)
    v = jax.random.normal(kv_, (bsz, seqlen, n_kv_heads, head_dim), dtype=jnp.float32)

    # KVCache buffers (transpose_cache=True layout): (B, KVH, T, D), zero-initialized.
    k_cache = jnp.zeros((max_batch_size, n_kv_heads, max_seq_len, head_dim), jnp.float32)
    v_cache = jnp.zeros((max_batch_size, n_kv_heads, max_seq_len, head_dim), jnp.float32)

    # Additive causal mask over the full max_seq_len window (0 allowed, -inf masked).
    rows = jnp.arange(max_seq_len)[:, None]
    cols = jnp.arange(max_seq_len)[None, :]
    mask = jnp.where(cols <= rows, 0.0, -jnp.inf).astype(jnp.float32)

    input_pos = jnp.arange(seqlen, dtype=jnp.int32)

    out, _, _ = sdpa_forward(
        input_pos, q, k, v, k_cache, v_cache, mask, n_rep, dim, kv_block=128
    )
    out = jax.block_until_ready(out)

    ref = _reference(input_pos, q, k, v, k_cache, v_cache, mask, n_rep, dim)
    assert out.shape == (bsz, seqlen, dim)
    assert jnp.allclose(out, ref, rtol=1e-5, atol=1e-5), float(jnp.max(jnp.abs(out - ref)))

    print("KERNEL_OK")
</pallas_src>

<mosaic_0001>
module attributes {stable_mosaic.version = 11 : i64} {
  func.func @_flash_sdpa_kernel(%arg0: i32, %arg1: i32, %arg2: i32, %arg3: memref<1x1x16x64xf32, #tpu.memory_space<vmem>>, %arg4: memref<1x1x128x64xf32, #tpu.memory_space<vmem>>, %arg5: memref<1x1x128x64xf32, #tpu.memory_space<vmem>>, %arg6: memref<8x128xf32, #tpu.memory_space<vmem>>, %arg7: memref<1x1x16x64xf32, #tpu.memory_space<vmem>>, %arg8: memref<16x1xf32, #tpu.memory_space<vmem>>, %arg9: memref<16x1xf32, #tpu.memory_space<vmem>>, %arg10: memref<16x64xf32, #tpu.memory_space<vmem>>) attributes {dimension_semantics = [#tpu.dimension_semantics<parallel>, #tpu.dimension_semantics<parallel>, #tpu.dimension_semantics<arbitrary>], iteration_bounds = array<i64: 2, 2, 2>, scalar_prefetch = 0 : i64, scratch_operands = 3 : i64, tpu.core_type = #tpu.core_type<tc>, window_params = [{transform_indices = @transform_0, window_bounds = array<i64: 1, 1, 16, 64>}, {transform_indices = @transform_1, window_bounds = array<i64: 1, 1, 128, 64>}, {transform_indices = @transform_2, window_bounds = array<i64: 1, 1, 128, 64>}, {transform_indices = @transform_3, window_bounds = array<i64: 8, 128>}, {transform_indices = @transform_4, window_bounds = array<i64: 1, 1, 16, 64>}]} {
    %c0_i32 = arith.constant 0 : i32
    %0 = arith.cmpi eq, %arg2, %c0_i32 : i32
    %1 = arith.extui %0 : i1 to i32
    %c0_i32_0 = arith.constant 0 : i32
    %2 = arith.cmpi ne, %1, %c0_i32_0 : i32
    scf.if %2 {
      %cst_33 = arith.constant 0xFF800000 : f32
      %44 = vector.broadcast %cst_33 : f32 to vector<16x1xf32>
      %c0_34 = arith.constant 0 : index
      %c0_35 = arith.constant 0 : index
      %45 = vector.load %arg8[%c0_34, %c0_35] : memref<16x1xf32, #tpu.memory_space<vmem>>, vector<16x1xf32>
      tpu.vector_store %arg8[%c0_34, %c0_35], %44 {strides = array<i32>} : memref<16x1xf32, #tpu.memory_space<vmem>>, vector<16x1xf32>,
      %cst_36 = arith.constant 0.000000e+00 : f32
      %46 = vector.broadcast %cst_36 : f32 to vector<16x1xf32>
      %c0_37 = arith.constant 0 : index
      %c0_38 = arith.constant 0 : index
      %47 = vector.load %arg9[%c0_37, %c0_38] : memref<16x1xf32, #tpu.memory_space<vmem>>, vector<16x1xf32>
      tpu.vector_store %arg9[%c0_37, %c0_38], %46 {strides = array<i32>} : memref<16x1xf32, #tpu.memory_space<vmem>>, vector<16x1xf32>,
      %cst_39 = arith.constant 0.000000e+00 : f32
      %48 = vector.broadcast %cst_39 : f32 to vector<16x64xf32>
      %c0_40 = arith.constant 0 : index
      %c0_41 = arith.constant 0 : index
      %49 = vector.load %arg10[%c0_40, %c0_41] : memref<16x64xf32, #tpu.memory_space<vmem>>, vector<16x64xf32>
      tpu.vector_store %arg10[%c0_40, %c0_41], %48 {strides = array<i32>} : memref<16x64xf32, #tpu.memory_space<vmem>>, vector<16x64xf32>,
    } else {
    }
    %c0 = arith.constant 0 : index
    %c0_1 = arith.constant 0 : index
    %c0_2 = arith.constant 0 : index
    %c0_3 = arith.constant 0 : index
    %3 = vector.load %arg3[%c0, %c0_1, %c0_2, %c0_3] : memref<1x1x16x64xf32, #tpu.memory_space<vmem>>, vector<1x1x16x64xf32>
    %4 = vector.shape_cast %3 : vector<1x1x16x64xf32> to vector<16x64xf32>
    %cst = arith.constant 1.250000e-01 : f32
    %5 = vector.broadcast %cst : f32 to vector<16x64xf32>
    %6 = arith.mulf %4, %5 : vector<16x64xf32>
    %c0_4 = arith.constant 0 : index
    %c0_5 = arith.constant 0 : index
    %c0_6 = arith.constant 0 : index
    %c0_7 = arith.constant 0 : index
    %7 = vector.load %arg4[%c0_4, %c0_5, %c0_6, %c0_7] : memref<1x1x128x64xf32, #tpu.memory_space<vmem>>, vector<1x1x128x64xf32>
    %8 = vector.shape_cast %7 : vector<1x1x128x64xf32> to vector<128x64xf32>
    %c0_8 = arith.constant 0 : index
    %c0_9 = arith.constant 0 : index
    %c0_10 = arith.constant 0 : index
    %c0_11 = arith.constant 0 : index
    %9 = vector.load %arg5[%c0_8, %c0_9, %c0_10, %c0_11] : memref<1x1x128x64xf32, #tpu.memory_space<vmem>>, vector<1x1x128x64xf32>
    %10 = vector.shape_cast %9 : vector<1x1x128x64xf32> to vector<128x64xf32>
    %cst_12 = arith.constant dense<0.000000e+00> : vector<16x128xf32>
    %11 = tpu.matmul %6, %8, %cst_12 {dimension_numbers = #tpu.dot_dimension_numbers<[1], [1], [0], [0], [0, 0, 1, 0], [], []>} : vector<16x64xf32>, vector<128x64xf32>, vector<16x128xf32> -> vector<16x128xf32>
    %c0_13 = arith.constant 0 : index
    %c0_14 = arith.constant 0 : index
    %12 = vector.load %arg6[%c0_13, %c0_14] : memref<8x128xf32, #tpu.memory_space<vmem>>, vector<8x128xf32>
    %13 = tpu.concatenate %12, %12 in 0 : vector<8x128xf32>, vector<8x128xf32> -> vector<16x128xf32>
    %14 = arith.addf %11, %13 : vector<16x128xf32>
    %c0_15 = arith.constant 0 : index
    %c0_16 = arith.constant 0 : index
    %15 = vector.load %arg8[%c0_15, %c0_16] : memref<16x1xf32, #tpu.memory_space<vmem>>, vector<16x1xf32>
    %cst_17 = arith.constant dense<0xFF800000> : vector<16xf32>
    %16 = vector.multi_reduction <maximumf>, %14, %cst_17 [1] : vector<16x128xf32> to vector<16xf32>
    %17 = vector.shape_cast %16 : vector<16xf32> to vector<16x1xf32>
    %18 = arith.maximumf %15, %17 : vector<16x1xf32>
    %cst_18 = arith.constant 0xFF800000 : f32
    %19 = vector.broadcast %cst_18 : f32 to vector<16x1xf32>
    %20 = arith.cmpf ogt, %18, %19 : vector<16x1xf32>
    %cst_19 = arith.constant 0.000000e+00 : f32
    %21 = vector.broadcast %cst_19 : f32 to vector<16x1xf32>
    %22 = arith.select %20, %18, %21 : vector<16x1xi1>, vector<16x1xf32>
    %23 = arith.subf %15, %22 : vector<16x1xf32>
    %24 = math.exp %23 : vector<16x1xf32>
    %25 = vector.broadcast %22 : vector<16x1xf32> to vector<16x128xf32>
    %26 = arith.subf %14, %25 : vector<16x128xf32>
    %27 = math.exp %26 : vector<16x128xf32>
    %c0_20 = arith.constant 0 : index
    %c0_21 = arith.constant 0 : index
    %28 = vector.load %arg9[%c0_20, %c0_21] : memref<16x1xf32, #tpu.memory_space<vmem>>, vector<16x1xf32>
    %29 = arith.mulf %24, %28 : vector<16x1xf32>
    %cst_22 = arith.constant dense<0.000000e+00> : vector<16xf32>
    %30 = vector.multi_reduction <add>, %27, %cst_22 [1] : vector<16x128xf32> to vector<16xf32>
    %31 = vector.shape_cast %30 : vector<16xf32> to vector<16x1xf32>
    %32 = arith.addf %29, %31 : vector<16x1xf32>
    %c0_23 = arith.constant 0 : index
    %c0_24 = arith.constant 0 : index
    %33 = vector.load %arg9[%c0_23, %c0_24] : memref<16x1xf32, #tpu.memory_space<vmem>>, vector<16x1xf32>
    tpu.vector_store %arg9[%c0_23, %c0_24], %32 {strides = array<i32>} : memref<16x1xf32, #tpu.memory_space<vmem>>, vector<16x1xf32>,
    %c0_25 = arith.constant 0 : index
    %c0_26 = arith.constant 0 : index
    %34 = vector.load %arg10[%c0_25, %c0_26] : memref<16x64xf32, #tpu.memory_space<vmem>>, vector<16x64xf32>
    %35 = vector.broadcast %24 : vector<16x1xf32> to vector<16x64xf32>
    %36 = arith.mulf %35, %34 : vector<16x64xf32>
    %cst_27 = arith.constant dense<0.000000e+00> : vector<16x64xf32>
    %37 = tpu.matmul %27, %10, %cst_27 {dimension_numbers = #tpu.dot_dimension_numbers<[1], [0], [0], [1], [0, 0, 1, 1], [], []>} : vector<16x128xf32>, vector<128x64xf32>, vector<16x64xf32> -> vector<16x64xf32>
    %38 = arith.addf %36, %37 : vector<16x64xf32>
    %c0_28 = arith.constant 0 : index
    %c0_29 = arith.constant 0 : index
    %39 = vector.load %arg10[%c0_28, %c0_29] : memref<16x64xf32, #tpu.memory_space<vmem>>, vector<16x64xf32>
    tpu.vector_store %arg10[%c0_28, %c0_29], %38 {strides = array<i32>} : memref<16x64xf32, #tpu.memory_space<vmem>>, vector<16x64xf32>,
    %c0_30 = arith.constant 0 : index
    %c0_31 = arith.constant 0 : index
    %40 = vector.load %arg8[%c0_30, %c0_31] : memref<16x1xf32, #tpu.memory_space<vmem>>, vector<16x1xf32>
    tpu.vector_store %arg8[%c0_30, %c0_31], %18 {strides = array<i32>} : memref<16x1xf32, #tpu.memory_space<vmem>>, vector<16x1xf32>,
    %c1_i32 = arith.constant 1 : i32
    %41 = arith.cmpi eq, %arg2, %c1_i32 : i32
    %42 = arith.extui %41 : i1 to i32
    %c0_i32_32 = arith.constant 0 : i32
    %43 = arith.cmpi ne, %42, %c0_i32_32 : i32
    scf.if %43 {
      %c0_33 = arith.constant 0 : index
      %c0_34 = arith.constant 0 : index
      %44 = vector.load %arg9[%c0_33, %c0_34] : memref<16x1xf32, #tpu.memory_space<vmem>>, vector<16x1xf32>
      %cst_35 = arith.constant 0.000000e+00 : f32
      %45 = vector.broadcast %cst_35 : f32 to vector<16x1xf32>
      %46 = arith.cmpf oeq, %44, %45 : vector<16x1xf32>
      %cst_36 = arith.constant 1.000000e+00 : f32
      %47 = vector.broadcast %cst_36 : f32 to vector<16x1xf32>
      %48 = arith.select %46, %47, %44 : vector<16x1xi1>, vector<16x1xf32>
      %c0_37 = arith.constant 0 : index
      %c0_38 = arith.constant 0 : index
      %49 = vector.load %arg10[%c0_37, %c0_38] : memref<16x64xf32, #tpu.memory_space<vmem>>, vector<16x64xf32>
      %50 = tpu.reciprocal %48 : vector<16x1xf32> -> vector<16x1xf32>
      %51 = vector.broadcast %50 : vector<16x1xf32> to vector<16x64xf32>
      %52 = arith.mulf %49, %51 : vector<16x64xf32>
      %c0_39 = arith.constant 0 : index
      %c0_40 = arith.constant 0 : index
      %c0_41 = arith.constant 0 : index
      %c0_42 = arith.constant 0 : index
      %53 = vector.load %arg7[%c0_39, %c0_40, %c0_41, %c0_42] : memref<1x1x16x64xf32, #tpu.memory_space<vmem>>, vector<1x1x16x64xf32>
      %54 = vector.shape_cast %53 : vector<1x1x16x64xf32> to vector<16x64xf32>
      %55 = vector.shape_cast %52 : vector<16x64xf32> to vector<1x1x16x64xf32>
      tpu.vector_store %arg7[%c0_39, %c0_40, %c0_41, %c0_42], %55 {strides = array<i32>} : memref<1x1x16x64xf32, #tpu.memory_space<vmem>>, vector<1x1x16x64xf32>,
    } else {
    }
    return
  }
  func.func @transform_0(%arg0: i32, %arg1: i32, %arg2: i32) -> (i32, i32, i32, i32) {
    %c0_i32 = arith.constant 0 : i32
    %c0_i32_0 = arith.constant 0 : i32
    %c0_i32_1 = arith.constant 0 : i32
    return %arg0, %arg1, %c0_i32, %c0_i32_0 : i32, i32, i32, i32
  }
  func.func @transform_1(%arg0: i32, %arg1: i32, %arg2: i32) -> (i32, i32, i32, i32) {
    %c0_i32 = arith.constant 0 : i32
    %c0_i32_0 = arith.constant 0 : i32
    return %arg0, %arg1, %arg2, %c0_i32 : i32, i32, i32, i32
  }
  func.func @transform_2(%arg0: i32, %arg1: i32, %arg2: i32) -> (i32, i32, i32, i32) {
    %c0_i32 = arith.constant 0 : i32
    %c0_i32_0 = arith.constant 0 : i32
    return %arg0, %arg1, %arg2, %c0_i32 : i32, i32, i32, i32
  }
  func.func @transform_3(%arg0: i32, %arg1: i32, %arg2: i32) -> (i32, i32) {
    %c0_i32 = arith.constant 0 : i32
    %c0_i32_0 = arith.constant 0 : i32
    return %c0_i32, %arg2 : i32, i32
  }
  func.func @transform_4(%arg0: i32, %arg1: i32, %arg2: i32) -> (i32, i32, i32, i32) {
    %c0_i32 = arith.constant 0 : i32
    %c0_i32_0 = arith.constant 0 : i32
    %c0_i32_1 = arith.constant 0 : i32
    return %arg0, %arg1, %c0_i32, %c0_i32_0 : i32, i32, i32, i32
  }
}

</mosaic_0001>

<llo_original>
// kernel: tpu_custom_call.1
$region0: #{tpu_custom_call.1}
  #allocation0 [shape = 'u32[]', space=smem, size = 0x4, offset = 0x4, fixed_abs, tag = 'smem constant byte address 0x4 - core index']
  #allocation1 [shape = 'u32[144,128]{1,0:T(1,128)}', space=vmem, size = 0x12000, scoped, tag = 'internal scratch']
  #allocation2 [shape = 'f32[16,1]{1,0:T(8,128)}', space=vmem, size = 0x2000, scoped, tag = 'scratch operand']
  #allocation3 [shape = 'f32[16,1]{1,0:T(8,128)}', space=vmem, size = 0x2000, scoped, tag = 'scratch operand']
  #allocation4 [shape = 'f32[16,64]{1,0:T(8,128)}', space=vmem, size = 0x2000, scoped, tag = 'scratch operand']
  %s0 = inlined_call_operand.hbm [shape: f32[2,2,16,64], index: 0, kind: input, shape index: {}]
  %s1 = inlined_call_operand.hbm [shape: f32[2,2,256,64], index: 1, kind: input, shape index: {}]
  %s2 = inlined_call_operand.hbm [shape: f32[2,2,256,64], index: 2, kind: input, shape index: {}]
  %s3 = inlined_call_operand.hbm [shape: f32[8,256], index: 3, kind: input, shape index: {}]
  %s4 = inlined_call_operand.hbm [shape: f32[2,2,16,64], index: 4, kind: output, shape index: {}]
  %s5 = sld [smem:[#allocation0]]
  $region73: #{tpu_custom_call.1} parent=0
    _
  %s7 = ssub.s32 1, %s5
  %s8 = scalar_select 0, %s7, %s5
  $region1: #{tpu_custom_call.1} parent=0
    #allocation5 [shape = 'u8[16384]{0}', space=vmem, size = 0x4000, scoped, tag = 'input window, operand 0']
    #allocation6 [shape = 's32[2]{0}', space=sflag, size = 0x8, scoped, tag = 'scoped memory for tpu_custom_call.1']
    #allocation7 [shape = 's32[2]{0}', space=sflag, size = 0x8, scoped, tag = 'scoped memory for tpu_custom_call.1']
    #allocation8 [shape = 'u8[131072]{0}', space=vmem, size = 0x20000, scoped, tag = 'input window, operand 1']
    #allocation9 [shape = 's32[2]{0}', space=sflag, size = 0x8, scoped, tag = 'scoped memory for tpu_custom_call.1']
    #allocation10 [shape = 'u8[131072]{0}', space=vmem, size = 0x20000, scoped, tag = 'input window, operand 2']
    #allocation11 [shape = 'u8[8192]{0}', space=vmem, size = 0x2000, scoped, tag = 'input window, operand 3']
    #allocation12 [shape = 's32[2]{0}', space=sflag, size = 0x8, scoped, tag = 'scoped memory for tpu_custom_call.1']
    #allocation13 [shape = 'u8[16384]{0}', space=vmem, size = 0x4000, scoped, tag = 'output window, operand 0']
    %9 = vsyncpa [#allocation6], 0
    %s10 = scalar_lea.sflag [#allocation6], 1
    %11 = vsyncpa %s10, 0
    %12 = vsyncpa [#allocation9], 0
    %s13 = scalar_lea.sflag [#allocation9], 1
    %14 = vsyncpa %s13, 0
    %15 = vsyncpa [#allocation12], 0
    %s16 = scalar_lea.sflag [#allocation12], 1
    %17 = vsyncpa %s16, 0
    %18 = vsyncpa [#allocation7], 0
    %s19 = scalar_lea.sflag [#allocation7], 1
    %20 = vsyncpa %s19, 0
    loop: start=0, step=1, limit=10
    $region2: #{tpu_custom_call.1} parent=1 // loop_pre_header
      _
    $region3: #{tpu_custom_call.1} parent=1 // loop_header
      %s22 = sphi 0, %s26
      %p23 = scmp.ge.s32.totalorder %s22, 10
      %s29 = sphi 0, %s48
      %s30 = sphi 0, %s44
      %s31 = sphi 0, %s40
      %s32 = sphi 0, %s29
      %s33 = sphi 0, %s30
      %s34 = sphi 0, %s31
      %s35 = sphi 0, %s32
      %s36 = sphi 0, %s33
      %s37 = sphi 0, %s34
      %s53 = sphi 0, %s55
      %s56 = sphi 0, %s53
      %s57 = sphi 0, %s56
      %s73 = sphi 0, %s57
      %s83 = sphi 0, %s85
      %s86 = sphi 0, %s83
      %s87 = sphi 0, %s86
      %s103 = sphi 0, %s87
      %s113 = sphi 0, %s115
      %s116 = sphi 0, %s113
      %s117 = sphi 0, %s116
      %s133 = sphi 0, %s117
      %s139 = sphi 0, %s141
      %s142 = sphi 0, %s139
      %s143 = sphi 0, %s142
      %s159 = sphi 0, %s143
      %s167 = sphi 0, %s169
      %s170 = sphi 0, %s167
      %s171 = sphi 0, %s170
      %s187 = sphi 0, %s171
    $region4: #{tpu_custom_call.1} parent=1 // loop_header_branch
      %25 = sbr.rel (%p23) target = $region8
    $region5: #{tpu_custom_call.1} parent=1 // loop_body
      %s27 = ssub.s32 %s22, 1
      %s28 = ssub.s32 %s22, 2
      %s38 = sadd.s32 1, %s31
      %p39 = scmp.ge.s32.totalorder %s38, 2
      %s40 = scalar_select %p39, 0, %s38
      %s41 = sadd.s32 1, %s30
      %s42 = scalar_select %p39, %s41, %s30
      %p43 = scmp.ge.s32.totalorder %s42, 2
      %s44 = scalar_select %p43, 0, %s42
      %s45 = sadd.s32 1, %s29
      %s46 = scalar_select %p43, %s45, %s29
      %p47 = scmp.ge.s32.totalorder %s46, 2
      %s48 = scalar_select %p47, 0, %s46
      %s49 = ssub.s32 %s29, %s48
      %s50 = ssub.s32 %s30, %s44
      %s51 = sor.u32 %s49, %s50
      %p52 = scmp.eq.s32.totalorder %s51, 0
      %s54 = sadd.s32 %s53, 1
      %s55 = scalar_select %p52, %s53, %s54
      %p58 = pneg %p52
      %p59 = scmp.eq.s32.totalorder %s22, 7
      %p60 = por %p58, %p59
      %p61 = scmp.ne.s32.totalorder %s53, %s56
      %p62 = scmp.eq.s32.totalorder %s22, 0
      %p63 = por %p61, %p62
      %p64 = scmp.ne.s32.totalorder %s53, %s56
      %p65 = scmp.eq.s32.totalorder %s27, 7
      %p66 = por %p64, %p65
      %p67 = scmp.ne.s32.totalorder %s56, %s57
      %p68 = scmp.eq.s32.totalorder %s27, 0
      %p69 = por %p67, %p68
      %p70 = scmp.ne.s32.totalorder %s56, %s57
      %p71 = scmp.eq.s32.totalorder %s28, 7
      %p72 = por %p70, %p71
      %p74 = scmp.ne.s32.totalorder %s57, %s73
      %p75 = scmp.eq.s32.totalorder %s28, 0
      %p76 = por %p74, %p75
      %s77 = ssub.s32 %s29, %s48
      %s78 = ssub.s32 %s30, %s44
      %s79 = sor.u32 %s77, %s78
      %s80 = ssub.s32 %s31, %s40
      %s81 = sor.u32 %s79, %s80
      %p82 = scmp.eq.s32.totalorder %s81, 0
      %s84 = sadd.s32 %s83, 1
      %s85 = scalar_select %p82, %s83, %s84
      %p88 = pneg %p82
      %p89 = scmp.eq.s32.totalorder %s22, 7
      %p90 = por %p88, %p89
      %p91 = scmp.ne.s32.totalorder %s83, %s86
      %p92 = scmp.eq.s32.totalorder %s22, 0
      %p93 = por %p91, %p92
      %p94 = scmp.ne.s32.totalorder %s83, %s86
      %p95 = scmp.eq.s32.totalorder %s27, 7
      %p96 = por %p94, %p95
      %p97 = scmp.ne.s32.totalorder %s86, %s87
      %p98 = scmp.eq.s32.totalorder %s27, 0
      %p99 = por %p97, %p98
      %p100 = scmp.ne.s32.totalorder %s86, %s87
      %p101 = scmp.eq.s32.totalorder %s28, 7
      %p102 = por %p100, %p101
      %p104 = scmp.ne.s32.totalorder %s87, %s103
      %p105 = scmp.eq.s32.totalorder %s28, 0
      %p106 = por %p104, %p105
      %s107 = ssub.s32 %s29, %s48
      %s108 = ssub.s32 %s30, %s44
      %s109 = sor.u32 %s107, %s108
      %s110 = ssub.s32 %s31, %s40
      %s111 = sor.u32 %s109, %s110
      %p112 = scmp.eq.s32.totalorder %s111, 0
      %s114 = sadd.s32 %s113, 1
      %s115 = scalar_select %p112, %s113, %s114
      %p118 = pneg %p112
      %p119 = scmp.eq.s32.totalorder %s22, 7
      %p120 = por %p118, %p119
      %p121 = scmp.ne.s32.totalorder %s113, %s116
      %p122 = scmp.eq.s32.totalorder %s22, 0
      %p123 = por %p121, %p122
      %p124 = scmp.ne.s32.totalorder %s113, %s116
      %p125 = scmp.eq.s32.totalorder %s27, 7
      %p126 = por %p124, %p125
      %p127 = scmp.ne.s32.totalorder %s116, %s117
      %p128 = scmp.eq.s32.totalorder %s27, 0
      %p129 = por %p127, %p128
      %p130 = scmp.ne.s32.totalorder %s116, %s117
      %p131 = scmp.eq.s32.totalorder %s28, 7
      %p132 = por %p130, %p131
      %p134 = scmp.ne.s32.totalorder %s117, %s133
      %p135 = scmp.eq.s32.totalorder %s28, 0
      %p136 = por %p134, %p135
      %s137 = ssub.s32 %s31, %s40
      %p138 = scmp.eq.s32.totalorder %s137, 0
      %s140 = sadd.s32 %s139, 1
      %s141 = scalar_select %p138, %s139, %s140
      %p144 = pneg %p138
      %p145 = scmp.eq.s32.totalorder %s22, 7
      %p146 = por %p144, %p145
      %p147 = scmp.ne.s32.totalorder %s139, %s142
      %p148 = scmp.eq.s32.totalorder %s22, 0
      %p149 = por %p147, %p148
      %p150 = scmp.ne.s32.totalorder %s139, %s142
      %p151 = scmp.eq.s32.totalorder %s27, 7
      %p152 = por %p150, %p151
      %p153 = scmp.ne.s32.totalorder %s142, %s143
      %p154 = scmp.eq.s32.totalorder %s27, 0
      %p155 = por %p153, %p154
      %p156 = scmp.ne.s32.totalorder %s142, %s143
      %p157 = scmp.eq.s32.totalorder %s28, 7
      %p158 = por %p156, %p157
      %p160 = scmp.ne.s32.totalorder %s143, %s159
      %p161 = scmp.eq.s32.totalorder %s28, 0
      %p162 = por %p160, %p161
      %s163 = ssub.s32 %s29, %s48
      %s164 = ssub.s32 %s30, %s44
      %s165 = sor.u32 %s163, %s164
      %p166 = scmp.eq.s32.totalorder %s165, 0
      %s168 = sadd.s32 %s167, 1
      %s169 = scalar_select %p166, %s167, %s168
      %p172 = pneg %p166
      %p173 = scmp.eq.s32.totalorder %s22, 7
      %p174 = por %p172, %p173
      %p175 = scmp.ne.s32.totalorder %s167, %s170
      %p176 = scmp.eq.s32.totalorder %s22, 0
      %p177 = por %p175, %p176
      %p178 = scmp.ne.s32.totalorder %s167, %s170
      %p179 = scmp.eq.s32.totalorder %s27, 7
      %p180 = por %p178, %p179
      %p181 = scmp.ne.s32.totalorder %s170, %s171
      %p182 = scmp.eq.s32.totalorder %s27, 0
      %p183 = por %p181, %p182
      %p184 = scmp.ne.s32.totalorder %s170, %s171
      %p185 = scmp.eq.s32.totalorder %s28, 7
      %p186 = por %p184, %p185
      %p188 = scmp.ne.s32.totalorder %s171, %s187
      %p189 = scmp.eq.s32.totalorder %s28, 0
      %p190 = por %p188, %p189
      %p191 = scmp.le.s32.totalorder 1, %s22
      %p192 = scmp.lt.s32.totalorder %s22, 9
      %p193 = pnand %p191, %p192
      %p194 = pneg %p193
      // Predicated region
      $region9: #{tpu_custom_call.1} parent=5 // pred_check
        _
      $region10: #{tpu_custom_call.1} parent=5 // pred_check_branch
        %196 = sbr.rel (%p193) target = $region12
      $region11: #{tpu_custom_call.1} parent=5 // pred_region
        %s197 = ssub.s32 %s22, 1
      $region12: #{tpu_custom_call.1} parent=5 // pred_fallthru
        _
      %p198 = scmp.lt.s32.totalorder %s22, 8
      // Predicated region
      $region13: #{tpu_custom_call.1} parent=5 // pred_check
        %p199 = pneg %p198
      $region14: #{tpu_custom_call.1} parent=5 // pred_check_branch
        %201 = sbr.rel (%p199) target = $region16
      $region15: #{tpu_custom_call.1} parent=5 // pred_region
        // Predicated region
        $region17: #{tpu_custom_call.1} parent=15 // pred_check
          %p202 = pneg %p63
        $region18: #{tpu_custom_call.1} parent=15 // pred_check_branch
          %204 = sbr.rel (%p202) target = $region20
        $region19: #{tpu_custom_call.1} parent=15 // pred_region
          %s205 = sand.u32 %s53, 1
          %s206 = scalar_lea.sflag [#allocation6], %s205
          %s207 = sand.u32 %s53, 1
          %s208 = smul.addr %s207, 16
          %s209 = scalar_lea.vmem [#allocation5], %s208
          %s211 = ssub.s32 256, 256
          %212 = vsyncadd %s206, %s211
          %s213 = smul.addr %s30, 2
          %s214 = smul.addr %s29, 4
          %s215 = sadd.s32 %s213, %s214
          %s216 = smul.addr %s215, 128
          %s217 = scalar_lea.hbm %s0, %s216
          %s218 = sshll.u32 %s209, 4
          %s219 = int_to_ptr.vmem [resolvable:$true] %s218
          %224 = dma.hbm_to_vmem [thread:$0]  %s217, 256, %s219, %s206, 128, 128, 8
        $region20: #{tpu_custom_call.1} parent=15 // pred_fallthru
          _
        // Predicated region
        $region21: #{tpu_custom_call.1} parent=15 // pred_check
          %p225 = pneg %p93
        $region22: #{tpu_custom_call.1} parent=15 // pred_check_branch
          %227 = sbr.rel (%p225) target = $region24
        $region23: #{tpu_custom_call.1} parent=15 // pred_region
          %s228 = sand.u32 %s22, 1
          %s229 = scalar_lea.sflag [#allocation9], %s228
          %s230 = sand.u32 %s83, 1
          %s231 = smul.addr %s230, 128
          %s232 = scalar_lea.vmem [#allocation8], %s231
          %s233 = smul.u32 16, %s31
          %s235 = ssub.s32 2048, 2048
          %236 = vsyncadd %s229, %s235
          %s237 = smul.addr %s30, 32
          %s238 = sadd.s32 %s233, %s237
          %s239 = smul.addr %s29, 64
          %s240 = sadd.s32 %s238, %s239
          %s241 = smul.addr %s240, 128
          %s242 = scalar_lea.hbm %s1, %s241
          %s243 = sshll.u32 %s232, 4
          %s244 = int_to_ptr.vmem [resolvable:$true] %s243
          %249 = dma.hbm_to_vmem [thread:$0]  %s242, 2048, %s244, %s229, 128, 128, 8
        $region24: #{tpu_custom_call.1} parent=15 // pred_fallthru
          _
        // Predicated region
        $region25: #{tpu_custom_call.1} parent=15 // pred_check
          %p250 = pneg %p123
        $region26: #{tpu_custom_call.1} parent=15 // pred_check_branch
          %252 = sbr.rel (%p250) target = $region28
        $region27: #{tpu_custom_call.1} parent=15 // pred_region
          %s253 = sand.u32 %s22, 1
          %s254 = scalar_lea.sflag [#allocation9], %s253
          %s255 = sand.u32 %s113, 1
          %s256 = smul.addr %s255, 128
          %s257 = scalar_lea.vmem [#allocation10], %s256
          %s258 = smul.u32 16, %s31
          %s260 = ssub.s32 2048, 2048
          %261 = vsyncadd %s254, %s260
          %s262 = smul.addr %s30, 32
          %s263 = sadd.s32 %s258, %s262
          %s264 = smul.addr %s29, 64
          %s265 = sadd.s32 %s263, %s264
          %s266 = smul.addr %s265, 128
          %s267 = scalar_lea.hbm %s2, %s266
          %s268 = sshll.u32 %s257, 4
          %s269 = int_to_ptr.vmem [resolvable:$true] %s268
          %274 = dma.hbm_to_vmem [thread:$0]  %s267, 2048, %s269, %s254, 128, 128, 8
        $region28: #{tpu_custom_call.1} parent=15 // pred_fallthru
          _
        // Predicated region
        $region29: #{tpu_custom_call.1} parent=15 // pred_check
          %p275 = pneg %p149
        $region30: #{tpu_custom_call.1} parent=15 // pred_check_branch
          %277 = sbr.rel (%p275) target = $region32
        $region31: #{tpu_custom_call.1} parent=15 // pred_region
          %s278 = sand.u32 %s139, 1
          %s279 = scalar_lea.sflag [#allocation12], %s278
          %s280 = sand.u32 %s139, 1
          %s281 = smul.addr %s280, 8
          %s282 = scalar_lea.vmem [#allocation11], %s281
          %s284 = ssub.s32 128, 128
          %285 = vsyncadd %s279, %s284
          %s286 = smul.addr %s31, 128
          %s287 = scalar_lea.hbm %s3, %s286
          %s289 = sshll.u32 %s282, 4
          %s290 = int_to_ptr.vmem [resolvable:$true] %s289
          %292 = dma.hbm_to_vmem [thread:$0]  %s287, 128, %s290, %s279
        $region32: #{tpu_custom_call.1} parent=15 // pred_fallthru
          _
      $region16: #{tpu_custom_call.1} parent=5 // pred_fallthru
        _
      %p293 = scmp.le.s32.totalorder 1, %s22
      %p294 = scmp.lt.s32.totalorder %s22, 9
      %p295 = pnand %p293, %p294
      %p296 = pneg %p295
      // Predicated region
      $region33: #{tpu_custom_call.1} parent=5 // pred_check
        _
      $region34: #{tpu_custom_call.1} parent=5 // pred_check_branch
        %298 = sbr.rel (%p295) target = $region36
      $region35: #{tpu_custom_call.1} parent=5 // pred_region
        %s299 = ssub.s32 %s22, 1
        %s300 = sand.u32 %s56, 1
        %s301 = scalar_lea.sflag [#allocation6], %s300
        %s302 = sand.u32 %s56, 1
        %s303 = smul.addr %s302, 16
        %s304 = scalar_lea.vmem [#allocation5], %s303
        // Predicated region
        $region37: #{tpu_custom_call.1} parent=35 // pred_check
          %p305 = pneg %p69
        $region38: #{tpu_custom_call.1} parent=35 // pred_check_branch
          %307 = sbr.rel (%p305) target = $region40
        $region39: #{tpu_custom_call.1} parent=35 // pred_region
          %308 = dma.done %s301, 256
        $region40: #{tpu_custom_call.1} parent=35 // pred_fallthru
          _
        %s309 = sand.u32 %s27, 1
        %s310 = scalar_lea.sflag [#allocation9], %s309
        %s311 = sand.u32 %s86, 1
        %s312 = smul.addr %s311, 128
        %s313 = scalar_lea.vmem [#allocation8], %s312
        // Predicated region
        $region41: #{tpu_custom_call.1} parent=35 // pred_check
          %p314 = pneg %p99
        $region42: #{tpu_custom_call.1} parent=35 // pred_check_branch
          %316 = sbr.rel (%p314) target = $region44
        $region43: #{tpu_custom_call.1} parent=35 // pred_region
          %317 = dma.done %s310, 2048
        $region44: #{tpu_custom_call.1} parent=35 // pred_fallthru
          _
        %s318 = sand.u32 %s27, 1
        %s319 = scalar_lea.sflag [#allocation9], %s318
        %s320 = sand.u32 %s116, 1
        %s321 = smul.addr %s320, 128
        %s322 = scalar_lea.vmem [#allocation10], %s321
        // Predicated region
        $region45: #{tpu_custom_call.1} parent=35 // pred_check
          %p323 = pneg %p129
        $region46: #{tpu_custom_call.1} parent=35 // pred_check_branch
          %325 = sbr.rel (%p323) target = $region48
        $region47: #{tpu_custom_call.1} parent=35 // pred_region
          %326 = dma.done %s319, 2048
        $region48: #{tpu_custom_call.1} parent=35 // pred_fallthru
          _
        %s327 = sand.u32 %s142, 1
        %s328 = scalar_lea.sflag [#allocation12], %s327
        %s329 = sand.u32 %s142, 1
        %s330 = smul.addr %s329, 8
        %s331 = scalar_lea.vmem [#allocation11], %s330
        // Predicated region
        $region49: #{tpu_custom_call.1} parent=35 // pred_check
          %p332 = pneg %p155
        $region50: #{tpu_custom_call.1} parent=35 // pred_check_branch
          %334 = sbr.rel (%p332) target = $region52
        $region51: #{tpu_custom_call.1} parent=35 // pred_region
          %335 = dma.done %s328, 128
        $region52: #{tpu_custom_call.1} parent=35 // pred_fallthru
          _
        %s336 = sand.u32 %s56, 1
        %s337 = scalar_lea.sflag [#allocation6], %s336
        %s338 = sand.u32 %s56, 1
        %s339 = smul.addr %s338, 16
        %s340 = scalar_lea.vmem [#allocation5], %s339
        %p341 = pneg %p69
        %p342 = pneg %p66
        %s343 = sand.u32 %s27, 1
        %s344 = scalar_lea.sflag [#allocation9], %s343
        %s345 = sand.u32 %s86, 1
        %s346 = smul.addr %s345, 128
        %s347 = scalar_lea.vmem [#allocation8], %s346
        %p348 = pneg %p99
        %p349 = pneg %p96
        %s350 = sand.u32 %s27, 1
        %s351 = scalar_lea.sflag [#allocation9], %s350
        %s352 = sand.u32 %s116, 1
        %s353 = smul.addr %s352, 128
        %s354 = scalar_lea.vmem [#allocation10], %s353
        %p355 = pneg %p129
        %p356 = pneg %p126
        %s357 = sand.u32 %s142, 1
        %s358 = scalar_lea.sflag [#allocation12], %s357
        %s359 = sand.u32 %s142, 1
        %s360 = smul.addr %s359, 8
        %s361 = scalar_lea.vmem [#allocation11], %s360
        %p362 = pneg %p155
        %p363 = pneg %p152
        %p364 = pneg %p183
        %p365 = pneg %p180
        %s366 = sand.u32 %s170, 1
        %s367 = scalar_lea.sflag [#allocation7], %s366
        %s368 = sand.u32 %s170, 1
        %s369 = smul.addr %s368, 16
        %s370 = scalar_lea.vmem [#allocation13], %s369
        %s371 = smul.u32 16, %s34
        %s372 = smul.u32 16, %s34
        %p373 = scmp.eq.s32.totalorder %s34, 0
        // Predicated region
        $region53: #{tpu_custom_call.1} parent=35 // pred_check
          %p374 = pneg %p373
        $region54: #{tpu_custom_call.1} parent=35 // pred_check_branch
          %376 = sbr.rel (%p374) target = $region56
        $region55: #{tpu_custom_call.1} parent=35 // pred_region
          %vm377 = vcmask 7168
          %378 = vst.msk [vmem:[#allocation2] sm:$0xff] %vm377, -inf
          %379 = vst.msk [vmem:[#allocation2 + $0x8] sm:$0xff] %vm377, -inf
          %380 = vst.msk [vmem:[#allocation3] sm:$0xff] %vm377, 0.0
          %381 = vst.msk [vmem:[#allocation3 + $0x8] sm:$0xff] %vm377, 0.0
          %vm382 = vcmask 523264
          %383 = vst.msk [vmem:[#allocation4] sm:$0xff] %vm382, 0.0
          %384 = vst.msk [vmem:[#allocation4 + $0x8] sm:$0xff] %vm382, 0.0
        $region56: #{tpu_custom_call.1} parent=35 // pred_fallthru
          _
        %v385 = vld [vmem:[%s304] sm:$0xff]
        %v386 = vld [vmem:[%s304 + $0x8] sm:$0xff]
        %v387 = vmul.f32 %v385, 0.125
        %v388 = vmul.f32 %v386, 0.125
        %v389 = vld [vmem:[%s313] sm:$0xff]
        %v390 = vld [vmem:[%s313 + $0x8] sm:$0xff]
        %v391 = vld [vmem:[%s313 + $0x10] sm:$0xff]
        %v392 = vld [vmem:[%s313 + $0x18] sm:$0xff]
        %v393 = vld [vmem:[%s313 + $0x20] sm:$0xff]
        %v394 = vld [vmem:[%s313 + $0x28] sm:$0xff]
        %v395 = vld [vmem:[%s313 + $0x30] sm:$0xff]
        %v396 = vld [vmem:[%s313 + $0x38] sm:$0xff]
        %v397 = vld [vmem:[%s313 + $0x40] sm:$0xff]
        %v398 = vld [vmem:[%s313 + $0x48] sm:$0xff]
        %v399 = vld [vmem:[%s313 + $0x50] sm:$0xff]
        %v400 = vld [vmem:[%s313 + $0x58] sm:$0xff]
        %v401 = vld [vmem:[%s313 + $0x60] sm:$0xff]
        %v402 = vld [vmem:[%s313 + $0x68] sm:$0xff]
        %v403 = vld [vmem:[%s313 + $0x70] sm:$0xff]
        %v404 = vld [vmem:[%s313 + $0x78] sm:$0xff]
        %v405 = vld [vmem:[%s322] sm:$0xff]
        %v406 = vld [vmem:[%s322 + $0x8] sm:$0xff]
        %v407 = vld [vmem:[%s322 + $0x10] sm:$0xff]
        %v408 = vld [vmem:[%s322 + $0x18] sm:$0xff]
        %v409 = vld [vmem:[%s322 + $0x20] sm:$0xff]
        %v410 = vld [vmem:[%s322 + $0x28] sm:$0xff]
        %v411 = vld [vmem:[%s322 + $0x30] sm:$0xff]
        %v412 = vld [vmem:[%s322 + $0x38] sm:$0xff]
        %v413 = vld [vmem:[%s322 + $0x40] sm:$0xff]
        %v414 = vld [vmem:[%s322 + $0x48] sm:$0xff]
        %v415 = vld [vmem:[%s322 + $0x50] sm:$0xff]
        %v416 = vld [vmem:[%s322 + $0x58] sm:$0xff]
        %v417 = vld [vmem:[%s322 + $0x60] sm:$0xff]
        %v418 = vld [vmem:[%s322 + $0x68] sm:$0xff]
        %v419 = vld [vmem:[%s322 + $0x70] sm:$0xff]
        %v420 = vld [vmem:[%s322 + $0x78] sm:$0xff]
        %v421 = vld [vmem:[%s331] sm:$0xff]
        %vm422 = vcmask 523264
        %v424 = vsel %vm422, %v387, 0
        %v427 = vsel %vm422, %v388, 0
        %v430 = vsel %vm422, %v389, 0
        %v433 = vsel %vm422, %v390, 0
        %v436 = vsel %vm422, %v391, 0
        %v439 = vsel %vm422, %v392, 0
        %v442 = vsel %vm422, %v393, 0
        %v445 = vsel %vm422, %v394, 0
        %v448 = vsel %vm422, %v395, 0
        %v451 = vsel %vm422, %v396, 0
        %v454 = vsel %vm422, %v397, 0
        %v457 = vsel %vm422, %v398, 0
        %v460 = vsel %vm422, %v399, 0
        %v463 = vsel %vm422, %v400, 0
        %v466 = vsel %vm422, %v401, 0
        %v469 = vsel %vm422, %v402, 0
        %v472 = vsel %vm422, %v403, 0
        %v475 = vsel %vm422, %v404, 0
        %477 = vmatprep.subr.mxu0 0.0
        %478 = vmatpush1.xpose.msra.mxu0 %v430
        %479 = vmatprep.subr.mxu0 0.0
        %480 = vmatpush1.xpose.msra.mxu0 %v433
        %481 = vmatprep.subr.mxu0 0.0
        %482 = vmatpush1.xpose.msra.mxu0 %v436
        %483 = vmatprep.subr.mxu0 0.0
        %484 = vmatpush1.xpose.msra.mxu0 %v439
        %485 = vmatprep.subr.mxu0 0.0
        %486 = vmatpush1.xpose.msra.mxu0 %v442
        %487 = vmatprep.subr.mxu0 0.0
        %488 = vmatpush1.xpose.msra.mxu0 %v445
        %489 = vmatprep.subr.mxu0 0.0
        %490 = vmatpush1.xpose.msra.mxu0 %v448
        %491 = vmatprep.subr.mxu0 0.0
        %492 = vmatpush1.xpose.msra.mxu0 %v451
        %493 = vmatprep.subr.mxu0 0.0
        %494 = vmatpush1.xpose.msra.mxu0 %v454
        %495 = vmatprep.subr.mxu0 0.0
        %496 = vmatpush1.xpose.msra.mxu0 %v457
        %497 = vmatprep.subr.mxu0 0.0
        %498 = vmatpush1.xpose.msra.mxu0 %v460
        %499 = vmatprep.subr.mxu0 0.0
        %500 = vmatpush1.xpose.msra.mxu0 %v463
        %501 = vmatprep.subr.mxu0 0.0
        %502 = vmatpush1.xpose.msra.mxu0 %v466
        %503 = vmatprep.subr.mxu0 0.0
        %504 = vmatpush1.xpose.msra.mxu0 %v469
        %505 = vmatprep.subr.mxu0 0.0
        %506 = vmatpush1.xpose.msra.mxu0 %v472
        %507 = vmatprep.subr.mxu0 0.0
        %508 = vmatpush1.xpose.msra.mxu0 %v475
        %509 = vmatprep.subr.mxu0 0.0
        %510 = vmatpush1.xpose.msra.mxu0 0.0
        %511 = vmatprep.subr.mxu0 0.0
        %512 = vmatpush1.xpose.msra.mxu0 0.0
        %513 = vmatprep.subr.mxu0 0.0
        %514 = vmatpush1.xpose.msra.mxu0 0.0
        %515 = vmatprep.subr.mxu0 0.0
        %516 = vmatpush1.xpose.msra.mxu0 0.0
        %517 = vmatprep.subr.mxu0 0.0
        %518 = vmatpush1.xpose.msra.mxu0 0.0
        %519 = vmatprep.subr.mxu0 0.0
        %520 = vmatpush1.xpose.msra.mxu0 0.0
        %521 = vmatprep.subr.mxu0 0.0
        %522 = vmatpush1.xpose.msra.mxu0 0.0
        %523 = vmatprep.subr.mxu0 0.0
        %524 = vmatpush1.xpose.msra.mxu0 0.0
        %525 = vmatprep.subr.mxu0 0.0
        %526 = vmatpush1.xpose.msra.mxu0 0.0
        %527 = vmatprep.subr.mxu0 0.0
        %528 = vmatpush1.xpose.msra.mxu0 0.0
        %529 = vmatprep.subr.mxu0 0.0
        %530 = vmatpush1.xpose.msra.mxu0 0.0
        %531 = vmatprep.subr.mxu0 0.0
        %532 = vmatpush1.xpose.msra.mxu0 0.0
        %533 = vmatprep.subr.mxu0 0.0
        %534 = vmatpush1.xpose.msra.mxu0 0.0
        %535 = vmatprep.subr.mxu0 0.0
        %536 = vmatpush1.xpose.msra.mxu0 0.0
        %537 = vmatprep.subr.mxu0 0.0
        %538 = vmatpush1.xpose.msra.mxu0 0.0
        %539 = vmatprep.subr.mxu0 0.0
        %540 = vmatpush1.xpose.msra.mxu0 0.0
        %541 = vmatprep.mubr.f32.mxu0 0.0
        %542 = vmatmul.mubr.f32.gmra.mrb[0].mxu0 %v424
        %v543 = vpop.f32.mrb[0].mxu0
        %v544 = vadd.f32 %v421, %v543
        %v545 = vpop.f32.mrb[0].mxu0
        %546 = vmatprep.mubr.f32.mxu0 0.0
        %547 = vmatmul.mubr.f32.gmra.mrb[0].mxu0 %v427
        %v548 = vpop.f32.mrb[0].mxu0
        %v549 = vadd.f32 %v421, %v548
        %v550 = vpop.f32.mrb[0].mxu0
        %551 = vdwg.mxu0
        %v552 = vld [vmem:[#allocation2] sm:$0xff]
        %v553 = vld [vmem:[#allocation2 + $0x8] sm:$0xff]
        %554 = vmax.xlane.f32.xlu0 %v544
        %v555 = vpop.xlane.xlu0 %554
        %556 = vmax.xlane.f32.xlu0 %v549
        %v557 = vpop.xlane.xlu0 %556
        %v558 = vmax.f32 %v552, %v555
        %v559 = vmax.f32 %v553, %v557
        %vm560 = vcmp.gt.f32.partialorder %v558, -inf
        %vm561 = vcmp.gt.f32.partialorder %v559, -inf
        %v562 = vsel %vm560, %v558, 0.0
        %v563 = vsel %vm561, %v559, 0.0
        %v564 = vsub.f32 %v552, %v562
        %v565 = vsub.f32 %v553, %v563
        %v566 = vmul.f32 %v564, 1.442695
        %v567 = vpow.pop %v566
        %v568 = vmul.f32 %v565, 1.442695
        %v569 = vpow.pop %v568
        %571 = vset.pattern.permute.xlu0 0
        %572 = vperm.xlu0 %571, %v562
        %v573 = vpop.permute.xlu0 %572
        %576 = vset.pattern.permute.xlu0 0
        %577 = vperm.xlu0 %576, %v563
        %v578 = vpop.permute.xlu0 %577
        %v580 = vsub.f32 %v544, %v573
        %v581 = vsub.f32 %v549, %v578
        %v582 = vmul.f32 %v580, 1.442695
        %v583 = vpow.pop %v582
        %v584 = vmul.f32 %v581, 1.442695
        %v585 = vpow.pop %v584
        %v586 = vld [vmem:[#allocation3] sm:$0xff]
        %v587 = vld [vmem:[#allocation3 + $0x8] sm:$0xff]
        %v588 = vmul.f32 %v567, %v586
        %v589 = vmul.f32 %v569, %v587
        %590 = vadd.xlane.f32.xlu0 %v583
        %v591 = vpop.xlane.xlu0 %590
        %592 = vadd.xlane.f32.xlu0 %v585
        %v593 = vpop.xlane.xlu0 %592
        %v594 = vadd.f32 %v588, %v591
        %v595 = vadd.f32 %v589, %v593
        %vm596 = vcmask 7168
        %597 = vst.msk [vmem:[#allocation3] sm:$0xff] %vm596, %v594
        %598 = vst.msk [vmem:[#allocation3 + $0x8] sm:$0xff] %vm596, %v595
        %v599 = vld [vmem:[#allocation4] sm:$0xff]
        %v600 = vld [vmem:[#allocation4 + $0x8] sm:$0xff]
        %602 = vset.pattern.permute.xlu0 0
        %603 = vperm.xlu0 %602, %v567
        %v604 = vpop.permute.xlu0 %603
        %607 = vset.pattern.permute.xlu0 0
        %608 = vperm.xlu0 %607, %v569
        %v609 = vpop.permute.xlu0 %608
        %v611 = vmul.f32 %v604, %v599
        %v612 = vmul.f32 %v609, %v600
        %613 = vmatprep.subr.mxu0 0.0
        %614 = vmatpush1.msra.mxu0 %v405
        %615 = vmatprep.subr.mxu0 0.0
        %616 = vmatpush1.msra.mxu0 %v406
        %617 = vmatprep.subr.mxu0 0.0
        %618 = vmatpush1.msra.mxu0 %v407
        %619 = vmatprep.subr.mxu0 0.0
        %620 = vmatpush1.msra.mxu0 %v408
        %621 = vmatprep.subr.mxu0 0.0
        %622 = vmatpush1.msra.mxu0 %v409
        %623 = vmatprep.subr.mxu0 0.0
        %624 = vmatpush1.msra.mxu0 %v410
        %625 = vmatprep.subr.mxu0 0.0
        %626 = vmatpush1.msra.mxu0 %v411
        %627 = vmatprep.subr.mxu0 0.0
        %628 = vmatpush1.msra.mxu0 %v412
        %629 = vmatprep.subr.mxu0 0.0
        %630 = vmatpush1.msra.mxu0 %v413
        %631 = vmatprep.subr.mxu0 0.0
        %632 = vmatpush1.msra.mxu0 %v414
        %633 = vmatprep.subr.mxu0 0.0
        %634 = vmatpush1.msra.mxu0 %v415
        %635 = vmatprep.subr.mxu0 0.0
        %636 = vmatpush1.msra.mxu0 %v416
        %637 = vmatprep.subr.mxu0 0.0
        %638 = vmatpush1.msra.mxu0 %v417
        %639 = vmatprep.subr.mxu0 0.0
        %640 = vmatpush1.msra.mxu0 %v418
        %641 = vmatprep.subr.mxu0 0.0
        %642 = vmatpush1.msra.mxu0 %v419
        %643 = vmatprep.subr.mxu0 0.0
        %644 = vmatpush1.msra.mxu0 %v420
        %645 = vmatprep.subr.mxu0 0.0
        %646 = vmatpush1.msra.mxu0 0.0
        %647 = vmatprep.subr.mxu0 0.0
        %648 = vmatpush1.msra.mxu0 0.0
        %649 = vmatprep.subr.mxu0 0.0
        %650 = vmatpush1.msra.mxu0 0.0
        %651 = vmatprep.subr.mxu0 0.0
        %652 = vmatpush1.msra.mxu0 0.0
        %653 = vmatprep.subr.mxu0 0.0
        %654 = vmatpush1.msra.mxu0 0.0
        %655 = vmatprep.subr.mxu0 0.0
        %656 = vmatpush1.msra.mxu0 0.0
        %657 = vmatprep.subr.mxu0 0.0
        %658 = vmatpush1.msra.mxu0 0.0
        %659 = vmatprep.subr.mxu0 0.0
        %660 = vmatpush1.msra.mxu0 0.0
        %661 = vmatprep.subr.mxu0 0.0
        %662 = vmatpush1.msra.mxu0 0.0
        %663 = vmatprep.subr.mxu0 0.0
        %664 = vmatpush1.msra.mxu0 0.0
        %665 = vmatprep.subr.mxu0 0.0
        %666 = vmatpush1.msra.mxu0 0.0
        %667 = vmatprep.subr.mxu0 0.0
        %668 = vmatpush1.msra.mxu0 0.0
        %669 = vmatprep.subr.mxu0 0.0
        %670 = vmatpush1.msra.mxu0 0.0
        %671 = vmatprep.subr.mxu0 0.0
        %672 = vmatpush1.msra.mxu0 0.0
        %673 = vmatprep.subr.mxu0 0.0
        %674 = vmatpush1.msra.mxu0 0.0
        %675 = vmatprep.subr.mxu0 0.0
        %676 = vmatpush1.msra.mxu0 0.0
        %677 = vmatprep.mubr.f32.mxu0 0.0
        %678 = vmatmul.mubr.f32.gmra.mrb[0].mxu0 %v583
        %v679 = vpop.f32.mrb[0].mxu0
        %v680 = vadd.f32 0.0, %v679
        %v681 = vpop.f32.mrb[0].mxu0
        %682 = vmatprep.mubr.f32.mxu0 0.0
        %683 = vmatmul.mubr.f32.gmra.mrb[0].mxu0 %v585
        %v684 = vpop.f32.mrb[0].mxu0
        %v685 = vadd.f32 0.0, %v684
        %v686 = vpop.f32.mrb[0].mxu0
        %687 = vdwg.mxu0
        %v688 = vadd.f32 %v611, %v680
        %v689 = vadd.f32 %v612, %v685
        %690 = vst.msk [vmem:[#allocation4] sm:$0xff] %vm422, %v688
        %691 = vst.msk [vmem:[#allocation4 + $0x8] sm:$0xff] %vm422, %v689
        %692 = vst.msk [vmem:[#allocation2] sm:$0xff] %vm596, %v558
        %693 = vst.msk [vmem:[#allocation2 + $0x8] sm:$0xff] %vm596, %v559
        %p694 = scmp.eq.s32.totalorder %s34, 1
        // Predicated region
        $region57: #{tpu_custom_call.1} parent=35 // pred_check
          %p695 = pneg %p694
        $region58: #{tpu_custom_call.1} parent=35 // pred_check_branch
          %697 = sbr.rel (%p695) target = $region60
        $region59: #{tpu_custom_call.1} parent=35 // pred_region
          %v698 = vld [vmem:[#allocation3] sm:$0xff]
          %v699 = vld [vmem:[#allocation3 + $0x8] sm:$0xff]
          %vm700 = vcmp.eq.f32.partialorder %v698, 0.0
          %vm701 = vcmp.eq.f32.partialorder %v699, 0.0
          %v702 = vsel %vm700, 1.0, %v698
          %v703 = vsel %vm701, 1.0, %v699
          %v704 = vld [vmem:[#allocation4] sm:$0xff]
          %v705 = vld [vmem:[#allocation4 + $0x8] sm:$0xff]
          %v706 = vrcp.pop %v702
          %v707 = vrcp.pop %v703
          %709 = vset.pattern.permute.xlu0 0
          %710 = vperm.xlu0 %709, %v706
          %v711 = vpop.permute.xlu0 %710
          %714 = vset.pattern.permute.xlu0 0
          %715 = vperm.xlu0 %714, %v707
          %v716 = vpop.permute.xlu0 %715
          %v718 = vmul.f32 %v704, %v711
          %v719 = vmul.f32 %v705, %v716
          %720 = vst.msk [vmem:[%s370] sm:$0xff] %vm422, %v718
          %721 = vst.msk [vmem:[%s370 + $0x8] sm:$0xff] %vm422, %v719
        $region60: #{tpu_custom_call.1} parent=35 // pred_fallthru
          _
        %s722 = sand.u32 %s170, 1
        %s723 = scalar_lea.sflag [#allocation7], %s722
        %s724 = sand.u32 %s170, 1
        %s725 = smul.addr %s724, 16
        %s726 = scalar_lea.vmem [#allocation13], %s725
        // Predicated region
        $region61: #{tpu_custom_call.1} parent=35 // pred_check
          %p727 = pneg %p180
        $region62: #{tpu_custom_call.1} parent=35 // pred_check_branch
          %729 = sbr.rel (%p727) target = $region64
        $region63: #{tpu_custom_call.1} parent=35 // pred_region
          %s731 = ssub.s32 256, 256
          %732 = vsyncadd %s723, %s731
          %s733 = smul.addr %s33, 2
          %s734 = smul.addr %s32, 4
          %s735 = sadd.s32 %s733, %s734
          %s736 = smul.addr %s735, 128
          %s737 = scalar_lea.hbm %s4, %s736
          %s738 = sshll.u32 %s726, 4
          %s739 = int_to_ptr.vmem [resolvable:$true] %s738
          %744 = dma.vmem_to_hbm [thread:$0]  %s739, 256, %s737, %s723, 128, 128, 8
        $region64: #{tpu_custom_call.1} parent=35 // pred_fallthru
          _
      $region36: #{tpu_custom_call.1} parent=5 // pred_fallthru
        _
      %p745 = scmp.le.s32.totalorder 2, %s22
      // Predicated region
      $region65: #{tpu_custom_call.1} parent=5 // pred_check
        %p746 = pneg %p745
      $region66: #{tpu_custom_call.1} parent=5 // pred_check_branch
        %748 = sbr.rel (%p746) target = $region68
      $region67: #{tpu_custom_call.1} parent=5 // pred_region
        %s749 = ssub.s32 %s22, 2
        // Predicated region
        $region69: #{tpu_custom_call.1} parent=67 // pred_check
          %p750 = pneg %p186
        $region70: #{tpu_custom_call.1} parent=67 // pred_check_branch
          %752 = sbr.rel (%p750) target = $region72
        $region71: #{tpu_custom_call.1} parent=67 // pred_region
          %s753 = sand.u32 %s171, 1
          %s754 = scalar_lea.sflag [#allocation7], %s753
          %s755 = sand.u32 %s171, 1
          %s756 = smul.addr %s755, 16
          %s757 = scalar_lea.vmem [#allocation13], %s756
          %758 = dma.done %s754, 256
        $region72: #{tpu_custom_call.1} parent=67 // pred_fallthru
          _
      $region68: #{tpu_custom_call.1} parent=5 // pred_fallthru
        _
    $region6: #{tpu_custom_call.1} parent=1 // loop_footer
      %s26 = sadd.s32 1, %s22
    $region7: #{tpu_custom_call.1} parent=1 // loop_footer_branch
      %21 = sbr.rel target = $region3
    $region8: #{tpu_custom_call.1} parent=1 // loop_exit
      _
    %759 = vsyncpa [#allocation6], 1
    %s760 = scalar_lea.sflag [#allocation6], 1
    %761 = vsyncpa %s760, 1
    %762 = vsyncpa [#allocation9], 1
    %s763 = scalar_lea.sflag [#allocation9], 1
    %764 = vsyncpa %s763, 1
    %765 = vsyncpa [#allocation12], 1
    %s766 = scalar_lea.sflag [#allocation12], 1
    %767 = vsyncpa %s766, 1
    %768 = vsyncpa [#allocation7], 1
    %s769 = scalar_lea.sflag [#allocation7], 1
    %770 = vsyncpa %s769, 1

</llo_original>
